<compile_context>
chip_gen: v7x
topology: tpu7x:2x2x1
jax: 0.10.0
libtpu: 0.0.40
codegen_flags: <defaults>
</compile_context>

<pallas_src>
import jax
import jax.numpy as jnp
from jax.experimental import pallas as pl
from jax.experimental.pallas import tpu as pltpu

LN_EPS = 1e-5


def prenorm_residual_kernel(x_ref, w_ref, b_ref, o_ref):
    """One row-tile: out = x + (LayerNorm_noaffine(x) @ W' + b')."""
    x = x_ref[...].astype(jnp.float32)                        # (TR, D)
    inv_d = jnp.float32(1.0 / x.shape[-1])

    # --- LayerNorm stats in one pass (both reductions issue back-to-back) ---
    s1 = jnp.sum(x, axis=-1, keepdims=True)                   # (TR, 1)
    s2 = jnp.sum(x * x, axis=-1, keepdims=True)               # (TR, 1)
    mean = s1 * inv_d
    var = jnp.maximum(s2 * inv_d - mean * mean, 0.0)          # guard tiny <0
    y = (x - mean) * jax.lax.rsqrt(var + LN_EPS)              # affine folded into W'/b'

    # --- sub_layer: Linear on the MXU (bf16 operands, f32 accumulation) ---
    z = jnp.dot(y.astype(w_ref.dtype), w_ref[...],
                preferred_element_type=jnp.float32)

    # --- dropout (identity at inference) + bias + residual ---
    # Re-read x from VMEM for the residual: keeps the big f32 x tile's live
    # range short (lower vreg pressure); the cast is cheap VPU work with slack.
    o_ref[...] = (x_ref[...].astype(jnp.float32) + z + b_ref[...]).astype(o_ref.dtype)


def _pick_tile_rows(R, tile_rows, mult):
    """Largest tr <= tile_rows that divides R, is a multiple of `mult`, and
    leaves n_tiles >= 2 when R allows it. Returns None if no clean divisor."""
    cap = min(tile_rows, max(mult, R // 2))   # >= 2 tiles whenever possible
    cap = max(mult, (cap // mult) * mult)
    for cand in range(cap, 0, -mult):
        if R % cand == 0:
            return cand
    return None


def prenorm_residual_sublayer(x, gamma, beta, w, b, *, tile_rows=512):
    """x: (B, S, D) -> (B, S, D).  w is (d_in, d_out) == PyTorch Linear weight.T."""
    B, S, D = x.shape
    R = B * S
    act_dtype = x.dtype
    mult = 16 if jnp.dtype(act_dtype).itemsize == 2 else 8   # sublane packing

    tr = _pick_tile_rows(R, tile_rows, mult)
    if tr is None:
        # Ragged fallback (extra HBM pass for pad + slice); avoided whenever
        # R = B*S is a multiple of the sublane packing, which it normally is.
        tr = max(mult, ((min(tile_rows, R) + mult - 1) // mult) * mult)
        R_pad = pl.cdiv(R, tr) * tr
    else:
        R_pad = R
    n_tiles = R_pad // tr

    x2 = x.reshape(R, D)
    if R_pad != R:
        x2 = jnp.pad(x2, ((0, R_pad - R), (0, 0)))

    # --- fold LN affine params into the linear layer, once, in f32 ---
    #   W' = diag(gamma) @ W ;  b' = beta @ W + b
    w_f32 = w.astype(jnp.float32)
    w_folded = (gamma.astype(jnp.float32)[:, None] * w_f32).astype(w.dtype)
    b_folded = (beta.astype(jnp.float32) @ w_f32
                + b.astype(jnp.float32)).reshape(1, D)        # f32 (1, D)

    # --- VMEM footprint: 2x-buffered x/out tiles + 1x-buffered W' + bias ---
    act_bytes = 2 * tr * D * x2.dtype.itemsize
    out_bytes = 2 * tr * D * jnp.dtype(act_dtype).itemsize
    w_bytes = D * D * w_folded.dtype.itemsize
    b_bytes = 8 * 128 * 4                                     # padded (1,D) tile
    footprint = act_bytes + out_bytes + w_bytes + b_bytes
    needed = int(footprint * 1.5) + (4 << 20)                 # compiler headroom
    # Only raise the scoped-VMEM limit when the default would not fit; never
    # request the full 64 MiB physical VMEM of a v7x TensorCore.
    vmem_limit = min(48 << 20, needed) if needed > (16 << 20) else None

    out2 = pl.pallas_call(
        prenorm_residual_kernel,
        out_shape=jax.ShapeDtypeStruct((R_pad, D), act_dtype),
        grid_spec=pltpu.PrefetchScalarGridSpec(
            num_scalar_prefetch=0,
            grid=(n_tiles,),
            in_specs=[
                pl.BlockSpec((tr, D), lambda i: (i, 0)),       # x row tile
                pl.BlockSpec((D, D), lambda i: (0, 0),         # W' (resident)
                             pipeline_mode=pl.Buffered(1)),
                pl.BlockSpec((1, D), lambda i: (0, 0),         # b' (resident)
                             pipeline_mode=pl.Buffered(1)),
            ],
            out_specs=pl.BlockSpec((tr, D), lambda i: (i, 0)),
        ),
        compiler_params=pltpu.CompilerParams(
            dimension_semantics=("parallel",),
            vmem_limit_bytes=vmem_limit,
        ),
    )(x2, w_folded, b_folded)

    if R_pad != R:
        out2 = out2[:R]
    return out2.reshape(B, S, D)


def reference(x, gamma, beta, w, b):
    """Pure-JAX reference faithful to the PyTorch module (f32 math)."""
    xf = x.astype(jnp.float32)
    mean = jnp.mean(xf, axis=-1, keepdims=True)
    var = jnp.mean((xf - mean) ** 2, axis=-1, keepdims=True)
    y = (xf - mean) * jax.lax.rsqrt(var + LN_EPS) * gamma.astype(jnp.float32) \
        + beta.astype(jnp.float32)
    z = jnp.dot(y, w.astype(jnp.float32),
                precision=jax.lax.Precision.HIGHEST) + b.astype(jnp.float32)
    return (xf + z).astype(x.dtype)


if __name__ == "__main__":
    B, S, D = 2, 256, 128          # batch, seq_len, d_model (D lane-dense)
    key = jax.random.PRNGKey(0)
    kx, kw, kb, kg, kbe = jax.random.split(key, 5)

    # Activations carried in bf16 (kernel output follows x's dtype).
    x = jax.random.normal(kx, (B, S, D), dtype=jnp.float32).astype(jnp.bfloat16)

    # LayerNorm params (perturbed from PyTorch default init so the fold is exercised).
    gamma = (1.0 + 0.1 * jax.random.normal(kg, (D,))).astype(jnp.float32)
    beta = (0.02 * jax.random.normal(kbe, (D,))).astype(jnp.float32)

    # Concrete sub_layer = Linear(d_model, d_model); stored here as (d_in, d_out),
    # i.e. the transpose of PyTorch's nn.Linear.weight. bf16 for the MXU path.
    w = (jax.random.normal(kw, (D, D), dtype=jnp.float32)
         / jnp.sqrt(D)).astype(jnp.bfloat16)
    b = (0.01 * jax.random.normal(kb, (D,))).astype(jnp.float32)

    out = prenorm_residual_sublayer(x, gamma, beta, w, b, tile_rows=512)
    out = jax.block_until_ready(out)

    ref = reference(x, gamma, beta, w, b)
    assert out.shape == (B, S, D)
    assert out.dtype == x.dtype
    # bf16 activation I/O + bf16 folded weights => loosened (but bounded) tolerance.
    assert jnp.allclose(out.astype(jnp.float32), ref.astype(jnp.float32),
                        atol=5e-2, rtol=5e-2), "mismatch vs reference"
    print("KERNEL_OK")
</pallas_src>

<mosaic_0001>
module attributes {stable_mosaic.version = 11 : i64} {
  func.func @prenorm_residual_kernel(%arg0: i32, %arg1: memref<256x128xbf16, #tpu.memory_space<vmem>>, %arg2: memref<128x128xbf16, #tpu.memory_space<vmem>>, %arg3: memref<1x128xf32, #tpu.memory_space<vmem>>, %arg4: memref<256x128xbf16, #tpu.memory_space<vmem>>) attributes {dimension_semantics = [#tpu.dimension_semantics<parallel>], iteration_bounds = array<i64: 2>, scalar_prefetch = 0 : i64, scratch_operands = 0 : i64, tpu.core_type = #tpu.core_type<tc>, window_params = [{transform_indices = @transform_0, window_bounds = array<i64: 256, 128>}, {pipeline_mode = #tpu.pipeline_mode<synchronous>, transform_indices = @transform_1, window_bounds = array<i64: 128, 128>}, {pipeline_mode = #tpu.pipeline_mode<synchronous>, transform_indices = @transform_2, window_bounds = array<i64: 1, 128>}, {transform_indices = @transform_3, window_bounds = array<i64: 256, 128>}]} {
    %c0 = arith.constant 0 : index
    %c0_0 = arith.constant 0 : index
    %0 = vector.load %arg1[%c0, %c0_0] : memref<256x128xbf16, #tpu.memory_space<vmem>>, vector<256x128xbf16>
    %1 = arith.extf %0 : vector<256x128xbf16> to vector<256x128xf32>
    %cst = arith.constant dense<0.000000e+00> : vector<256xf32>
    %2 = vector.multi_reduction <add>, %1, %cst [1] : vector<256x128xf32> to vector<256xf32>
    %3 = vector.shape_cast %2 : vector<256xf32> to vector<256x1xf32>
    %4 = arith.mulf %1, %1 : vector<256x128xf32>
    %cst_1 = arith.constant dense<0.000000e+00> : vector<256xf32>
    %5 = vector.multi_reduction <add>, %4, %cst_1 [1] : vector<256x128xf32> to vector<256xf32>
    %6 = vector.shape_cast %5 : vector<256xf32> to vector<256x1xf32>
    %cst_2 = arith.constant 7.812500e-03 : f32
    %7 = vector.broadcast %cst_2 : f32 to vector<256x1xf32>
    %8 = arith.mulf %3, %7 : vector<256x1xf32>
    %cst_3 = arith.constant 7.812500e-03 : f32
    %9 = vector.broadcast %cst_3 : f32 to vector<256x1xf32>
    %10 = arith.mulf %6, %9 : vector<256x1xf32>
    %11 = arith.mulf %8, %8 : vector<256x1xf32>
    %12 = arith.subf %10, %11 : vector<256x1xf32>
    %cst_4 = arith.constant 0.000000e+00 : f32
    %13 = vector.broadcast %cst_4 : f32 to vector<256x1xf32>
    %14 = arith.maximumf %12, %13 : vector<256x1xf32>
    %15 = vector.broadcast %8 : vector<256x1xf32> to vector<256x128xf32>
    %16 = arith.subf %1, %15 : vector<256x128xf32>
    %cst_5 = arith.constant 9.99999974E-6 : f32
    %17 = vector.broadcast %cst_5 : f32 to vector<256x1xf32>
    %18 = arith.addf %14, %17 : vector<256x1xf32>
    %19 = math.rsqrt %18 : vector<256x1xf32>
    %20 = vector.broadcast %19 : vector<256x1xf32> to vector<256x128xf32>
    %21 = arith.mulf %16, %20 : vector<256x128xf32>
    %22 = arith.truncf %21 : vector<256x128xf32> to vector<256x128xbf16>
    %c0_6 = arith.constant 0 : index
    %c0_7 = arith.constant 0 : index
    %23 = vector.load %arg2[%c0_6, %c0_7] : memref<128x128xbf16, #tpu.memory_space<vmem>>, vector<128x128xbf16>
    %cst_8 = arith.constant dense<0.000000e+00> : vector<256x128xf32>
    %24 = tpu.matmul %22, %23, %cst_8 {dimension_numbers = #tpu.dot_dimension_numbers<[1], [0], [0], [1], [0, 0, 1, 1], [], []>} : vector<256x128xbf16>, vector<128x128xbf16>, vector<256x128xf32> -> vector<256x128xf32>
    %c0_9 = arith.constant 0 : index
    %c0_10 = arith.constant 0 : index
    %25 = vector.load %arg1[%c0_9, %c0_10] : memref<256x128xbf16, #tpu.memory_space<vmem>>, vector<256x128xbf16>
    %26 = arith.extf %25 : vector<256x128xbf16> to vector<256x128xf32>
    %27 = arith.addf %26, %24 : vector<256x128xf32>
    %c0_11 = arith.constant 0 : index
    %c0_12 = arith.constant 0 : index
    %28 = vector.load %arg3[%c0_11, %c0_12] : memref<1x128xf32, #tpu.memory_space<vmem>>, vector<1x128xf32>
    %29 = vector.broadcast %28 : vector<1x128xf32> to vector<256x128xf32>
    %30 = arith.addf %27, %29 : vector<256x128xf32>
    %31 = arith.truncf %30 : vector<256x128xf32> to vector<256x128xbf16>
    %c0_13 = arith.constant 0 : index
    %c0_14 = arith.constant 0 : index
    %32 = vector.load %arg4[%c0_13, %c0_14] : memref<256x128xbf16, #tpu.memory_space<vmem>>, vector<256x128xbf16>
    tpu.vector_store %arg4[%c0_13, %c0_14], %31 {strides = array<i32>} : memref<256x128xbf16, #tpu.memory_space<vmem>>, vector<256x128xbf16>,
    return
  }
  func.func @transform_0(%arg0: i32) -> (i32, i32) {
    %c0_i32 = arith.constant 0 : i32
    %c0_i32_0 = arith.constant 0 : i32
    return %arg0, %c0_i32 : i32, i32
  }
  func.func @transform_1(%arg0: i32) -> (i32, i32) {
    %c0_i32 = arith.constant 0 : i32
    %c0_i32_0 = arith.constant 0 : i32
    %c0_i32_1 = arith.constant 0 : i32
    return %c0_i32, %c0_i32_0 : i32, i32
  }
  func.func @transform_2(%arg0: i32) -> (i32, i32) {
    %c0_i32 = arith.constant 0 : i32
    %c0_i32_0 = arith.constant 0 : i32
    %c0_i32_1 = arith.constant 0 : i32
    return %c0_i32, %c0_i32_0 : i32, i32
  }
  func.func @transform_3(%arg0: i32) -> (i32, i32) {
    %c0_i32 = arith.constant 0 : i32
    %c0_i32_0 = arith.constant 0 : i32
    return %arg0, %c0_i32 : i32, i32
  }
}

</mosaic_0001>

<llo_original>
// kernel: tpu_custom_call.1
$region0: #{tpu_custom_call.1}
  #allocation0 [shape = 'u32[]', space=smem, size = 0x4, offset = 0x4, fixed_abs, tag = 'smem constant byte address 0x4 - core index']
  #allocation1 [shape = 'u32[144,128]{1,0:T(1,128)}', space=vmem, size = 0x12000, scoped, tag = 'internal scratch']
  %s0 = inlined_call_operand.hbm [shape: bf16[512,128], index: 0, kind: input, shape index: {}]
  %s1 = inlined_call_operand.hbm [shape: bf16[128,128], index: 1, kind: input, shape index: {}]
  %s2 = inlined_call_operand.vmem [shape: f32[1,128], index: 2, kind: input, shape index: {}]
  %s3 = inlined_call_operand.hbm [shape: bf16[512,128], index: 3, kind: output, shape index: {}]
  %s4 = sld [smem:[#allocation0]]
  $region53: #{tpu_custom_call.1} parent=0
    _
  %s6 = ssub.s32 1, %s4
  %s7 = scalar_select 0, %s6, %s4
  $region1: #{tpu_custom_call.1} parent=0
    #allocation2 [shape = 'u8[131072]{0}', space=vmem, size = 0x20000, scoped, tag = 'input window, operand 0']
    #allocation3 [shape = 's32[2]{0}', space=sflag, size = 0x8, scoped, tag = 'scoped memory for tpu_custom_call.1']
    #allocation4 [shape = 's32[2]{0}', space=sflag, size = 0x8, scoped, tag = 'scoped memory for tpu_custom_call.1']
    #allocation5 [shape = 'u8[32768]{0}', space=vmem, size = 0x8000, scoped, tag = 'input window, operand 1, single buffered']
    #allocation6 [shape = 's32[1]{0}', space=sflag, size = 0x4, scoped, tag = 'scoped memory for tpu_custom_call.1']
    #allocation7 [shape = 'u8[131072]{0}', space=vmem, size = 0x20000, scoped, tag = 'output window, operand 0']
    %8 = vsyncpa [#allocation3], 0
    %s9 = scalar_lea.sflag [#allocation3], 1
    %10 = vsyncpa %s9, 0
    %11 = vsyncpa [#allocation6], 0
    %12 = vsyncpa [#allocation4], 0
    %s13 = scalar_lea.sflag [#allocation4], 1
    %14 = vsyncpa %s13, 0
    loop: start=0, step=1, limit=4
    $region2: #{tpu_custom_call.1} parent=1 // loop_pre_header
      _
    $region3: #{tpu_custom_call.1} parent=1 // loop_header
      %s16 = sphi 0, %s20
      %p17 = scmp.ge.s32.totalorder %s16, 4
      %s26 = sphi 0, %s28
      %s29 = sphi 0, %s26
      %s30 = sphi 0, %s29
      %s46 = sphi 0, %s30
      %s50 = sphi 0, %s50
      %s52 = sphi 0, %s50
      %s53 = sphi 0, %s52
      %s67 = sphi 0, %s53
      %s71 = sphi 0, %s71
      %s73 = sphi 0, %s71
      %s74 = sphi 0, %s73
      %s88 = sphi 0, %s74
      %s94 = sphi 0, %s96
      %s97 = sphi 0, %s94
      %s98 = sphi 0, %s97
      %s114 = sphi 0, %s98
    $region4: #{tpu_custom_call.1} parent=1 // loop_header_branch
      %19 = sbr.rel (%p17) target = $region8
    $region5: #{tpu_custom_call.1} parent=1 // loop_body
      %s21 = ssub.s32 %s16, 1
      %s22 = ssub.s32 %s16, 2
      %s23 = sadd.s32 %s16, 1
      %s24 = ssub.s32 %s16, %s23
      %p25 = scmp.eq.s32.totalorder %s24, 0
      %s27 = sadd.s32 %s26, 1
      %s28 = scalar_select %p25, %s26, %s27
      %p31 = pneg %p25
      %p32 = scmp.eq.s32.totalorder %s16, 1
      %p33 = por %p31, %p32
      %p34 = scmp.ne.s32.totalorder %s26, %s29
      %p35 = scmp.eq.s32.totalorder %s16, 0
      %p36 = por %p34, %p35
      %p37 = scmp.ne.s32.totalorder %s26, %s29
      %p38 = scmp.eq.s32.totalorder %s21, 1
      %p39 = por %p37, %p38
      %p40 = scmp.ne.s32.totalorder %s29, %s30
      %p41 = scmp.eq.s32.totalorder %s21, 0
      %p42 = por %p40, %p41
      %p43 = scmp.ne.s32.totalorder %s29, %s30
      %p44 = scmp.eq.s32.totalorder %s22, 1
      %p45 = por %p43, %p44
      %p47 = scmp.ne.s32.totalorder %s30, %s46
      %p48 = scmp.eq.s32.totalorder %s22, 0
      %p49 = por %p47, %p48
      %s51 = sadd.s32 %s50, 1
      %p54 = scmp.eq.s32.totalorder %s16, 1
      %p55 = scmp.ne.s32.totalorder %s50, %s52
      %p56 = scmp.eq.s32.totalorder %s16, 0
      %p57 = por %p55, %p56
      %p58 = scmp.ne.s32.totalorder %s50, %s52
      %p59 = scmp.eq.s32.totalorder %s21, 1
      %p60 = por %p58, %p59
      %p61 = scmp.ne.s32.totalorder %s52, %s53
      %p62 = scmp.eq.s32.totalorder %s21, 0
      %p63 = por %p61, %p62
      %p64 = scmp.ne.s32.totalorder %s52, %s53
      %p65 = scmp.eq.s32.totalorder %s22, 1
      %p66 = por %p64, %p65
      %p68 = scmp.ne.s32.totalorder %s53, %s67
      %p69 = scmp.eq.s32.totalorder %s22, 0
      %p70 = por %p68, %p69
      %s72 = sadd.s32 %s71, 1
      %p75 = scmp.eq.s32.totalorder %s16, 1
      %p76 = scmp.ne.s32.totalorder %s71, %s73
      %p77 = scmp.eq.s32.totalorder %s16, 0
      %p78 = por %p76, %p77
      %p79 = scmp.ne.s32.totalorder %s71, %s73
      %p80 = scmp.eq.s32.totalorder %s21, 1
      %p81 = por %p79, %p80
      %p82 = scmp.ne.s32.totalorder %s73, %s74
      %p83 = scmp.eq.s32.totalorder %s21, 0
      %p84 = por %p82, %p83
      %p85 = scmp.ne.s32.totalorder %s73, %s74
      %p86 = scmp.eq.s32.totalorder %s22, 1
      %p87 = por %p85, %p86
      %p89 = scmp.ne.s32.totalorder %s74, %s88
      %p90 = scmp.eq.s32.totalorder %s22, 0
      %p91 = por %p89, %p90
      %s92 = ssub.s32 %s16, %s23
      %p93 = scmp.eq.s32.totalorder %s92, 0
      %s95 = sadd.s32 %s94, 1
      %s96 = scalar_select %p93, %s94, %s95
      %p99 = pneg %p93
      %p100 = scmp.eq.s32.totalorder %s16, 1
      %p101 = por %p99, %p100
      %p102 = scmp.ne.s32.totalorder %s94, %s97
      %p103 = scmp.eq.s32.totalorder %s16, 0
      %p104 = por %p102, %p103
      %p105 = scmp.ne.s32.totalorder %s94, %s97
      %p106 = scmp.eq.s32.totalorder %s21, 1
      %p107 = por %p105, %p106
      %p108 = scmp.ne.s32.totalorder %s97, %s98
      %p109 = scmp.eq.s32.totalorder %s21, 0
      %p110 = por %p108, %p109
      %p111 = scmp.ne.s32.totalorder %s97, %s98
      %p112 = scmp.eq.s32.totalorder %s22, 1
      %p113 = por %p111, %p112
      %p115 = scmp.ne.s32.totalorder %s98, %s114
      %p116 = scmp.eq.s32.totalorder %s22, 0
      %p117 = por %p115, %p116
      %p118 = scmp.le.s32.totalorder 1, %s16
      %p119 = scmp.lt.s32.totalorder %s16, 3
      %p120 = pnand %p118, %p119
      %p121 = pneg %p120
      // Predicated region
      $region9: #{tpu_custom_call.1} parent=5 // pred_check
        _
      $region10: #{tpu_custom_call.1} parent=5 // pred_check_branch
        %123 = sbr.rel (%p120) target = $region12
      $region11: #{tpu_custom_call.1} parent=5 // pred_region
        %s124 = ssub.s32 %s16, 1
        // Predicated region
        $region13: #{tpu_custom_call.1} parent=11 // pred_check
          %p125 = pneg %p63
        $region14: #{tpu_custom_call.1} parent=11 // pred_check_branch
          %127 = sbr.rel (%p125) target = $region16
        $region15: #{tpu_custom_call.1} parent=11 // pred_region
          %s129 = ssub.s32 1024, 1024
          %130 = vsyncadd [#allocation6], %s129
          %s131 = sshll.u32 [#allocation5], 4
          %s132 = int_to_ptr.vmem [resolvable:$true] %s131
          %137 = dma.hbm_to_vmem [thread:$0]  %s1, 1024, %s132, [#allocation6], 64, 64, 4
        $region16: #{tpu_custom_call.1} parent=11 // pred_fallthru
          _
        // Predicated region
        $region17: #{tpu_custom_call.1} parent=11 // pred_check
          %p138 = pneg %p84
        $region18: #{tpu_custom_call.1} parent=11 // pred_check_branch
          %140 = sbr.rel (%p138) target = $region20
        $region19: #{tpu_custom_call.1} parent=11 // pred_region
          _
        $region20: #{tpu_custom_call.1} parent=11 // pred_fallthru
          _
      $region12: #{tpu_custom_call.1} parent=5 // pred_fallthru
        _
      %p141 = scmp.lt.s32.totalorder %s16, 2
      // Predicated region
      $region21: #{tpu_custom_call.1} parent=5 // pred_check
        %p142 = pneg %p141
      $region22: #{tpu_custom_call.1} parent=5 // pred_check_branch
        %144 = sbr.rel (%p142) target = $region24
      $region23: #{tpu_custom_call.1} parent=5 // pred_region
        // Predicated region
        $region25: #{tpu_custom_call.1} parent=23 // pred_check
          %p145 = pneg %p36
        $region26: #{tpu_custom_call.1} parent=23 // pred_check_branch
          %147 = sbr.rel (%p145) target = $region28
        $region27: #{tpu_custom_call.1} parent=23 // pred_region
          %s148 = sand.u32 %s26, 1
          %s149 = scalar_lea.sflag [#allocation3], %s148
          %s150 = sand.u32 %s26, 1
          %s151 = smul.addr %s150, 128
          %s152 = scalar_lea.vmem [#allocation2], %s151
          %s153 = smul.u32 32, %s16
          %s155 = ssub.s32 2048, 2048
          %156 = vsyncadd %s149, %s155
          %s157 = smul.addr %s153, 64
          %s158 = scalar_lea.hbm %s0, %s157
          %s159 = sshll.u32 %s152, 4
          %s160 = int_to_ptr.vmem [resolvable:$true] %s159
          %165 = dma.hbm_to_vmem [thread:$0]  %s158, 2048, %s160, %s149, 64, 64, 4
        $region28: #{tpu_custom_call.1} parent=23 // pred_fallthru
          _
      $region24: #{tpu_custom_call.1} parent=5 // pred_fallthru
        _
      %p166 = scmp.le.s32.totalorder 1, %s16
      %p167 = scmp.lt.s32.totalorder %s16, 3
      %p168 = pnand %p166, %p167
      %p169 = pneg %p168
      // Predicated region
      $region29: #{tpu_custom_call.1} parent=5 // pred_check
        _
      $region30: #{tpu_custom_call.1} parent=5 // pred_check_branch
        %171 = sbr.rel (%p168) target = $region32
      $region31: #{tpu_custom_call.1} parent=5 // pred_region
        %s172 = ssub.s32 %s16, 1
        %s173 = sand.u32 %s29, 1
        %s174 = scalar_lea.sflag [#allocation3], %s173
        %s175 = sand.u32 %s29, 1
        %s176 = smul.addr %s175, 128
        %s177 = scalar_lea.vmem [#allocation2], %s176
        // Predicated region
        $region33: #{tpu_custom_call.1} parent=31 // pred_check
          %p178 = pneg %p42
        $region34: #{tpu_custom_call.1} parent=31 // pred_check_branch
          %180 = sbr.rel (%p178) target = $region36
        $region35: #{tpu_custom_call.1} parent=31 // pred_region
          %181 = dma.done %s174, 2048
        $region36: #{tpu_custom_call.1} parent=31 // pred_fallthru
          _
        // Predicated region
        $region37: #{tpu_custom_call.1} parent=31 // pred_check
          %p182 = pneg %p63
        $region38: #{tpu_custom_call.1} parent=31 // pred_check_branch
          %184 = sbr.rel (%p182) target = $region40
        $region39: #{tpu_custom_call.1} parent=31 // pred_region
          %185 = dma.done [#allocation6], 1024
        $region40: #{tpu_custom_call.1} parent=31 // pred_fallthru
          _
        %s186 = sand.u32 %s29, 1
        %s187 = scalar_lea.sflag [#allocation3], %s186
        %s188 = sand.u32 %s29, 1
        %s189 = smul.addr %s188, 128
        %s190 = scalar_lea.vmem [#allocation2], %s189
        %p191 = pneg %p42
        %p192 = pneg %p39
        %p193 = pneg %p63
        %p194 = pneg %p60
        %p195 = pneg %p84
        %p196 = pneg %p81
        %p197 = pneg %p110
        %p198 = pneg %p107
        %s199 = sand.u32 %s97, 1
        %s200 = scalar_lea.sflag [#allocation4], %s199
        %s201 = sand.u32 %s97, 1
        %s202 = smul.addr %s201, 128
        %s203 = scalar_lea.vmem [#allocation7], %s202
        %s204 = smul.u32 32, %s21
        %s205 = smul.u32 32, %s21
        %v207 = vld [vmem:[%s177] sm:$0xf]
        %v208 = vld [vmem:[%s177 + $0x4] sm:$0xf]
        %v209 = vld [vmem:[%s177 + $0x8] sm:$0xf]
        %v210 = vld [vmem:[%s177 + $0xc] sm:$0xf]
        %v211 = vld [vmem:[%s177 + $0x10] sm:$0xf]
        %v212 = vld [vmem:[%s177 + $0x14] sm:$0xf]
        %v213 = vld [vmem:[%s177 + $0x18] sm:$0xf]
        %v214 = vld [vmem:[%s177 + $0x1c] sm:$0xf]
        %v215 = vld [vmem:[%s177 + $0x20] sm:$0xf]
        %v216 = vld [vmem:[%s177 + $0x24] sm:$0xf]
        %v217 = vld [vmem:[%s177 + $0x28] sm:$0xf]
        %v218 = vld [vmem:[%s177 + $0x2c] sm:$0xf]
        %v219 = vld [vmem:[%s177 + $0x30] sm:$0xf]
        %v220 = vld [vmem:[%s177 + $0x34] sm:$0xf]
        %v221 = vld [vmem:[%s177 + $0x38] sm:$0xf]
        %v222 = vld [vmem:[%s177 + $0x3c] sm:$0xf]
        %v223 = vld [vmem:[%s177 + $0x40] sm:$0xf]
        %v224 = vld [vmem:[%s177 + $0x44] sm:$0xf]
        %v225 = vld [vmem:[%s177 + $0x48] sm:$0xf]
        %v226 = vld [vmem:[%s177 + $0x4c] sm:$0xf]
        %v227 = vld [vmem:[%s177 + $0x50] sm:$0xf]
        %v228 = vld [vmem:[%s177 + $0x54] sm:$0xf]
        %v229 = vld [vmem:[%s177 + $0x58] sm:$0xf]
        %v230 = vld [vmem:[%s177 + $0x5c] sm:$0xf]
        %v231 = vld [vmem:[%s177 + $0x60] sm:$0xf]
        %v232 = vld [vmem:[%s177 + $0x64] sm:$0xf]
        %v233 = vld [vmem:[%s177 + $0x68] sm:$0xf]
        %v234 = vld [vmem:[%s177 + $0x6c] sm:$0xf]
        %v235 = vld [vmem:[%s177 + $0x70] sm:$0xf]
        %v236 = vld [vmem:[%s177 + $0x74] sm:$0xf]
        %v237 = vld [vmem:[%s177 + $0x78] sm:$0xf]
        %v238 = vld [vmem:[%s177 + $0x7c] sm:$0xf]
        %v239 = vunpack.c.l.bf16 %v207
        %v240 = vunpack.c.l.bf16 %v208
        %v241 = vunpack.c.l.bf16 %v209
        %v242 = vunpack.c.l.bf16 %v210
        %v243 = vunpack.c.l.bf16 %v211
        %v244 = vunpack.c.l.bf16 %v212
        %v245 = vunpack.c.l.bf16 %v213
        %v246 = vunpack.c.l.bf16 %v214
        %v247 = vunpack.c.l.bf16 %v215
        %v248 = vunpack.c.l.bf16 %v216
        %v249 = vunpack.c.l.bf16 %v217
        %v250 = vunpack.c.l.bf16 %v218
        %v251 = vunpack.c.l.bf16 %v219
        %v252 = vunpack.c.l.bf16 %v220
        %v253 = vunpack.c.l.bf16 %v221
        %v254 = vunpack.c.l.bf16 %v222
        %v255 = vunpack.c.l.bf16 %v223
        %v256 = vunpack.c.l.bf16 %v224
        %v257 = vunpack.c.l.bf16 %v225
        %v258 = vunpack.c.l.bf16 %v226
        %v259 = vunpack.c.l.bf16 %v227
        %v260 = vunpack.c.l.bf16 %v228
        %v261 = vunpack.c.l.bf16 %v229
        %v262 = vunpack.c.l.bf16 %v230
        %v263 = vunpack.c.l.bf16 %v231
        %v264 = vunpack.c.l.bf16 %v232
        %v265 = vunpack.c.l.bf16 %v233
        %v266 = vunpack.c.l.bf16 %v234
        %v267 = vunpack.c.l.bf16 %v235
        %v268 = vunpack.c.l.bf16 %v236
        %v269 = vunpack.c.l.bf16 %v237
        %v270 = vunpack.c.l.bf16 %v238
        %271 = vadd.xlane.f32.xlu0 %v239
        %v272 = vpop.xlane.xlu0 %271
        %273 = vadd.xlane.f32.xlu0 %v240
        %v274 = vpop.xlane.xlu0 %273
        %275 = vadd.xlane.f32.xlu0 %v241
        %v276 = vpop.xlane.xlu0 %275
        %277 = vadd.xlane.f32.xlu0 %v242
        %v278 = vpop.xlane.xlu0 %277
        %279 = vadd.xlane.f32.xlu0 %v243
        %v280 = vpop.xlane.xlu0 %279
        %281 = vadd.xlane.f32.xlu0 %v244
        %v282 = vpop.xlane.xlu0 %281
        %283 = vadd.xlane.f32.xlu0 %v245
        %v284 = vpop.xlane.xlu0 %283
        %285 = vadd.xlane.f32.xlu0 %v246
        %v286 = vpop.xlane.xlu0 %285
        %287 = vadd.xlane.f32.xlu0 %v247
        %v288 = vpop.xlane.xlu0 %287
        %289 = vadd.xlane.f32.xlu0 %v248
        %v290 = vpop.xlane.xlu0 %289
        %291 = vadd.xlane.f32.xlu0 %v249
        %v292 = vpop.xlane.xlu0 %291
        %293 = vadd.xlane.f32.xlu0 %v250
        %v294 = vpop.xlane.xlu0 %293
        %295 = vadd.xlane.f32.xlu0 %v251
        %v296 = vpop.xlane.xlu0 %295
        %297 = vadd.xlane.f32.xlu0 %v252
        %v298 = vpop.xlane.xlu0 %297
        %299 = vadd.xlane.f32.xlu0 %v253
        %v300 = vpop.xlane.xlu0 %299
        %301 = vadd.xlane.f32.xlu0 %v254
        %v302 = vpop.xlane.xlu0 %301
        %303 = vadd.xlane.f32.xlu0 %v255
        %v304 = vpop.xlane.xlu0 %303
        %305 = vadd.xlane.f32.xlu0 %v256
        %v306 = vpop.xlane.xlu0 %305
        %307 = vadd.xlane.f32.xlu0 %v257
        %v308 = vpop.xlane.xlu0 %307
        %309 = vadd.xlane.f32.xlu0 %v258
        %v310 = vpop.xlane.xlu0 %309
        %311 = vadd.xlane.f32.xlu0 %v259
        %v312 = vpop.xlane.xlu0 %311
        %313 = vadd.xlane.f32.xlu0 %v260
        %v314 = vpop.xlane.xlu0 %313
        %315 = vadd.xlane.f32.xlu0 %v261
        %v316 = vpop.xlane.xlu0 %315
        %317 = vadd.xlane.f32.xlu0 %v262
        %v318 = vpop.xlane.xlu0 %317
        %319 = vadd.xlane.f32.xlu0 %v263
        %v320 = vpop.xlane.xlu0 %319
        %321 = vadd.xlane.f32.xlu0 %v264
        %v322 = vpop.xlane.xlu0 %321
        %323 = vadd.xlane.f32.xlu0 %v265
        %v324 = vpop.xlane.xlu0 %323
        %325 = vadd.xlane.f32.xlu0 %v266
        %v326 = vpop.xlane.xlu0 %325
        %327 = vadd.xlane.f32.xlu0 %v267
        %v328 = vpop.xlane.xlu0 %327
        %329 = vadd.xlane.f32.xlu0 %v268
        %v330 = vpop.xlane.xlu0 %329
        %331 = vadd.xlane.f32.xlu0 %v269
        %v332 = vpop.xlane.xlu0 %331
        %333 = vadd.xlane.f32.xlu0 %v270
        %v334 = vpop.xlane.xlu0 %333
        %v335 = vmul.f32 %v239, %v239
        %v336 = vmul.f32 %v240, %v240
        %v337 = vmul.f32 %v241, %v241
        %v338 = vmul.f32 %v242, %v242
        %v339 = vmul.f32 %v243, %v243
        %v340 = vmul.f32 %v244, %v244
        %v341 = vmul.f32 %v245, %v245
        %v342 = vmul.f32 %v246, %v246
        %v343 = vmul.f32 %v247, %v247
        %v344 = vmul.f32 %v248, %v248
        %v345 = vmul.f32 %v249, %v249
        %v346 = vmul.f32 %v250, %v250
        %v347 = vmul.f32 %v251, %v251
        %v348 = vmul.f32 %v252, %v252
        %v349 = vmul.f32 %v253, %v253
        %v350 = vmul.f32 %v254, %v254
        %v351 = vmul.f32 %v255, %v255
        %v352 = vmul.f32 %v256, %v256
        %v353 = vmul.f32 %v257, %v257
        %v354 = vmul.f32 %v258, %v258
        %v355 = vmul.f32 %v259, %v259
        %v356 = vmul.f32 %v260, %v260
        %v357 = vmul.f32 %v261, %v261
        %v358 = vmul.f32 %v262, %v262
        %v359 = vmul.f32 %v263, %v263
        %v360 = vmul.f32 %v264, %v264
        %v361 = vmul.f32 %v265, %v265
        %v362 = vmul.f32 %v266, %v266
        %v363 = vmul.f32 %v267, %v267
        %v364 = vmul.f32 %v268, %v268
        %v365 = vmul.f32 %v269, %v269
        %v366 = vmul.f32 %v270, %v270
        %367 = vadd.xlane.f32.xlu0 %v335
        %v368 = vpop.xlane.xlu0 %367
        %369 = vadd.xlane.f32.xlu0 %v336
        %v370 = vpop.xlane.xlu0 %369
        %371 = vadd.xlane.f32.xlu0 %v337
        %v372 = vpop.xlane.xlu0 %371
        %373 = vadd.xlane.f32.xlu0 %v338
        %v374 = vpop.xlane.xlu0 %373
        %375 = vadd.xlane.f32.xlu0 %v339
        %v376 = vpop.xlane.xlu0 %375
        %377 = vadd.xlane.f32.xlu0 %v340
        %v378 = vpop.xlane.xlu0 %377
        %379 = vadd.xlane.f32.xlu0 %v341
        %v380 = vpop.xlane.xlu0 %379
        %381 = vadd.xlane.f32.xlu0 %v342
        %v382 = vpop.xlane.xlu0 %381
        %383 = vadd.xlane.f32.xlu0 %v343
        %v384 = vpop.xlane.xlu0 %383
        %385 = vadd.xlane.f32.xlu0 %v344
        %v386 = vpop.xlane.xlu0 %385
        %387 = vadd.xlane.f32.xlu0 %v345
        %v388 = vpop.xlane.xlu0 %387
        %389 = vadd.xlane.f32.xlu0 %v346
        %v390 = vpop.xlane.xlu0 %389
        %391 = vadd.xlane.f32.xlu0 %v347
        %v392 = vpop.xlane.xlu0 %391
        %393 = vadd.xlane.f32.xlu0 %v348
        %v394 = vpop.xlane.xlu0 %393
        %395 = vadd.xlane.f32.xlu0 %v349
        %v396 = vpop.xlane.xlu0 %395
        %397 = vadd.xlane.f32.xlu0 %v350
        %v398 = vpop.xlane.xlu0 %397
        %399 = vadd.xlane.f32.xlu0 %v351
        %v400 = vpop.xlane.xlu0 %399
        %401 = vadd.xlane.f32.xlu0 %v352
        %v402 = vpop.xlane.xlu0 %401
        %403 = vadd.xlane.f32.xlu0 %v353
        %v404 = vpop.xlane.xlu0 %403
        %405 = vadd.xlane.f32.xlu0 %v354
        %v406 = vpop.xlane.xlu0 %405
        %407 = vadd.xlane.f32.xlu0 %v355
        %v408 = vpop.xlane.xlu0 %407
        %409 = vadd.xlane.f32.xlu0 %v356
        %v410 = vpop.xlane.xlu0 %409
        %411 = vadd.xlane.f32.xlu0 %v357
        %v412 = vpop.xlane.xlu0 %411
        %413 = vadd.xlane.f32.xlu0 %v358
        %v414 = vpop.xlane.xlu0 %413
        %415 = vadd.xlane.f32.xlu0 %v359
        %v416 = vpop.xlane.xlu0 %415
        %417 = vadd.xlane.f32.xlu0 %v360
        %v418 = vpop.xlane.xlu0 %417
        %419 = vadd.xlane.f32.xlu0 %v361
        %v420 = vpop.xlane.xlu0 %419
        %421 = vadd.xlane.f32.xlu0 %v362
        %v422 = vpop.xlane.xlu0 %421
        %423 = vadd.xlane.f32.xlu0 %v363
        %v424 = vpop.xlane.xlu0 %423
        %425 = vadd.xlane.f32.xlu0 %v364
        %v426 = vpop.xlane.xlu0 %425
        %427 = vadd.xlane.f32.xlu0 %v365
        %v428 = vpop.xlane.xlu0 %427
        %429 = vadd.xlane.f32.xlu0 %v366
        %v430 = vpop.xlane.xlu0 %429
        %v431 = vmul.f32 %v272, 0.0078125
        %v432 = vmul.f32 %v274, 0.0078125
        %v433 = vmul.f32 %v276, 0.0078125
        %v434 = vmul.f32 %v278, 0.0078125
        %v435 = vmul.f32 %v280, 0.0078125
        %v436 = vmul.f32 %v282, 0.0078125
        %v437 = vmul.f32 %v284, 0.0078125
        %v438 = vmul.f32 %v286, 0.0078125
        %v439 = vmul.f32 %v288, 0.0078125
        %v440 = vmul.f32 %v290, 0.0078125
        %v441 = vmul.f32 %v292, 0.0078125
        %v442 = vmul.f32 %v294, 0.0078125
        %v443 = vmul.f32 %v296, 0.0078125
        %v444 = vmul.f32 %v298, 0.0078125
        %v445 = vmul.f32 %v300, 0.0078125
        %v446 = vmul.f32 %v302, 0.0078125
        %v447 = vmul.f32 %v304, 0.0078125
        %v448 = vmul.f32 %v306, 0.0078125
        %v449 = vmul.f32 %v308, 0.0078125
        %v450 = vmul.f32 %v310, 0.0078125
        %v451 = vmul.f32 %v312, 0.0078125
        %v452 = vmul.f32 %v314, 0.0078125
        %v453 = vmul.f32 %v316, 0.0078125
        %v454 = vmul.f32 %v318, 0.0078125
        %v455 = vmul.f32 %v320, 0.0078125
        %v456 = vmul.f32 %v322, 0.0078125
        %v457 = vmul.f32 %v324, 0.0078125
        %v458 = vmul.f32 %v326, 0.0078125
        %v459 = vmul.f32 %v328, 0.0078125
        %v460 = vmul.f32 %v330, 0.0078125
        %v461 = vmul.f32 %v332, 0.0078125
        %v462 = vmul.f32 %v334, 0.0078125
        %v463 = vmul.f32 %v368, 0.0078125
        %v464 = vmul.f32 %v370, 0.0078125
        %v465 = vmul.f32 %v372, 0.0078125
        %v466 = vmul.f32 %v374, 0.0078125
        %v467 = vmul.f32 %v376, 0.0078125
        %v468 = vmul.f32 %v378, 0.0078125
        %v469 = vmul.f32 %v380, 0.0078125
        %v470 = vmul.f32 %v382, 0.0078125
        %v471 = vmul.f32 %v384, 0.0078125
        %v472 = vmul.f32 %v386, 0.0078125
        %v473 = vmul.f32 %v388, 0.0078125
        %v474 = vmul.f32 %v390, 0.0078125
        %v475 = vmul.f32 %v392, 0.0078125
        %v476 = vmul.f32 %v394, 0.0078125
        %v477 = vmul.f32 %v396, 0.0078125
        %v478 = vmul.f32 %v398, 0.0078125
        %v479 = vmul.f32 %v400, 0.0078125
        %v480 = vmul.f32 %v402, 0.0078125
        %v481 = vmul.f32 %v404, 0.0078125
        %v482 = vmul.f32 %v406, 0.0078125
        %v483 = vmul.f32 %v408, 0.0078125
        %v484 = vmul.f32 %v410, 0.0078125
        %v485 = vmul.f32 %v412, 0.0078125
        %v486 = vmul.f32 %v414, 0.0078125
        %v487 = vmul.f32 %v416, 0.0078125
        %v488 = vmul.f32 %v418, 0.0078125
        %v489 = vmul.f32 %v420, 0.0078125
        %v490 = vmul.f32 %v422, 0.0078125
        %v491 = vmul.f32 %v424, 0.0078125
        %v492 = vmul.f32 %v426, 0.0078125
        %v493 = vmul.f32 %v428, 0.0078125
        %v494 = vmul.f32 %v430, 0.0078125
        %v495 = vmul.f32 %v431, %v431
        %v496 = vmul.f32 %v432, %v432
        %v497 = vmul.f32 %v433, %v433
        %v498 = vmul.f32 %v434, %v434
        %v499 = vmul.f32 %v435, %v435
        %v500 = vmul.f32 %v436, %v436
        %v501 = vmul.f32 %v437, %v437
        %v502 = vmul.f32 %v438, %v438
        %v503 = vmul.f32 %v439, %v439
        %v504 = vmul.f32 %v440, %v440
        %v505 = vmul.f32 %v441, %v441
        %v506 = vmul.f32 %v442, %v442
        %v507 = vmul.f32 %v443, %v443
        %v508 = vmul.f32 %v444, %v444
        %v509 = vmul.f32 %v445, %v445
        %v510 = vmul.f32 %v446, %v446
        %v511 = vmul.f32 %v447, %v447
        %v512 = vmul.f32 %v448, %v448
        %v513 = vmul.f32 %v449, %v449
        %v514 = vmul.f32 %v450, %v450
        %v515 = vmul.f32 %v451, %v451
        %v516 = vmul.f32 %v452, %v452
        %v517 = vmul.f32 %v453, %v453
        %v518 = vmul.f32 %v454, %v454
        %v519 = vmul.f32 %v455, %v455
        %v520 = vmul.f32 %v456, %v456
        %v521 = vmul.f32 %v457, %v457
        %v522 = vmul.f32 %v458, %v458
        %v523 = vmul.f32 %v459, %v459
        %v524 = vmul.f32 %v460, %v460
        %v525 = vmul.f32 %v461, %v461
        %v526 = vmul.f32 %v462, %v462
        %v527 = vsub.f32 %v463, %v495
        %v528 = vsub.f32 %v464, %v496
        %v529 = vsub.f32 %v465, %v497
        %v530 = vsub.f32 %v466, %v498
        %v531 = vsub.f32 %v467, %v499
        %v532 = vsub.f32 %v468, %v500
        %v533 = vsub.f32 %v469, %v501
        %v534 = vsub.f32 %v470, %v502
        %v535 = vsub.f32 %v471, %v503
        %v536 = vsub.f32 %v472, %v504
        %v537 = vsub.f32 %v473, %v505
        %v538 = vsub.f32 %v474, %v506
        %v539 = vsub.f32 %v475, %v507
        %v540 = vsub.f32 %v476, %v508
        %v541 = vsub.f32 %v477, %v509
        %v542 = vsub.f32 %v478, %v510
        %v543 = vsub.f32 %v479, %v511
        %v544 = vsub.f32 %v480, %v512
        %v545 = vsub.f32 %v481, %v513
        %v546 = vsub.f32 %v482, %v514
        %v547 = vsub.f32 %v483, %v515
        %v548 = vsub.f32 %v484, %v516
        %v549 = vsub.f32 %v485, %v517
        %v550 = vsub.f32 %v486, %v518
        %v551 = vsub.f32 %v487, %v519
        %v552 = vsub.f32 %v488, %v520
        %v553 = vsub.f32 %v489, %v521
        %v554 = vsub.f32 %v490, %v522
        %v555 = vsub.f32 %v491, %v523
        %v556 = vsub.f32 %v492, %v524
        %v557 = vsub.f32 %v493, %v525
        %v558 = vsub.f32 %v494, %v526
        %v559 = vmax.f32 %v527, 0.0
        %v560 = vmax.f32 %v528, 0.0
        %v561 = vmax.f32 %v529, 0.0
        %v562 = vmax.f32 %v530, 0.0
        %v563 = vmax.f32 %v531, 0.0
        %v564 = vmax.f32 %v532, 0.0
        %v565 = vmax.f32 %v533, 0.0
        %v566 = vmax.f32 %v534, 0.0
        %v567 = vmax.f32 %v535, 0.0
        %v568 = vmax.f32 %v536, 0.0
        %v569 = vmax.f32 %v537, 0.0
        %v570 = vmax.f32 %v538, 0.0
        %v571 = vmax.f32 %v539, 0.0
        %v572 = vmax.f32 %v540, 0.0
        %v573 = vmax.f32 %v541, 0.0
        %v574 = vmax.f32 %v542, 0.0
        %v575 = vmax.f32 %v543, 0.0
        %v576 = vmax.f32 %v544, 0.0
        %v577 = vmax.f32 %v545, 0.0
        %v578 = vmax.f32 %v546, 0.0
        %v579 = vmax.f32 %v547, 0.0
        %v580 = vmax.f32 %v548, 0.0
        %v581 = vmax.f32 %v549, 0.0
        %v582 = vmax.f32 %v550, 0.0
        %v583 = vmax.f32 %v551, 0.0
        %v584 = vmax.f32 %v552, 0.0
        %v585 = vmax.f32 %v553, 0.0
        %v586 = vmax.f32 %v554, 0.0
        %v587 = vmax.f32 %v555, 0.0
        %v588 = vmax.f32 %v556, 0.0
        %v589 = vmax.f32 %v557, 0.0
        %v590 = vmax.f32 %v558, 0.0
        %v591 = vsub.f32 %v239, %v431
        %v592 = vsub.f32 %v240, %v432
        %v593 = vsub.f32 %v241, %v433
        %v594 = vsub.f32 %v242, %v434
        %v595 = vsub.f32 %v243, %v435
        %v596 = vsub.f32 %v244, %v436
        %v597 = vsub.f32 %v245, %v437
        %v598 = vsub.f32 %v246, %v438
        %v599 = vsub.f32 %v247, %v439
        %v600 = vsub.f32 %v248, %v440
        %v601 = vsub.f32 %v249, %v441
        %v602 = vsub.f32 %v250, %v442
        %v603 = vsub.f32 %v251, %v443
        %v604 = vsub.f32 %v252, %v444
        %v605 = vsub.f32 %v253, %v445
        %v606 = vsub.f32 %v254, %v446
        %v607 = vsub.f32 %v255, %v447
        %v608 = vsub.f32 %v256, %v448
        %v609 = vsub.f32 %v257, %v449
        %v610 = vsub.f32 %v258, %v450
        %v611 = vsub.f32 %v259, %v451
        %v612 = vsub.f32 %v260, %v452
        %v613 = vsub.f32 %v261, %v453
        %v614 = vsub.f32 %v262, %v454
        %v615 = vsub.f32 %v263, %v455
        %v616 = vsub.f32 %v264, %v456
        %v617 = vsub.f32 %v265, %v457
        %v618 = vsub.f32 %v266, %v458
        %v619 = vsub.f32 %v267, %v459
        %v620 = vsub.f32 %v268, %v460
        %v621 = vsub.f32 %v269, %v461
        %v622 = vsub.f32 %v270, %v462
        %v623 = vadd.f32 %v559, 1e-05
        %v624 = vadd.f32 %v560, 1e-05
        %v625 = vadd.f32 %v561, 1e-05
        %v626 = vadd.f32 %v562, 1e-05
        %v627 = vadd.f32 %v563, 1e-05
        %v628 = vadd.f32 %v564, 1e-05
        %v629 = vadd.f32 %v565, 1e-05
        %v630 = vadd.f32 %v566, 1e-05
        %v631 = vadd.f32 %v567, 1e-05
        %v632 = vadd.f32 %v568, 1e-05
        %v633 = vadd.f32 %v569, 1e-05
        %v634 = vadd.f32 %v570, 1e-05
        %v635 = vadd.f32 %v571, 1e-05
        %v636 = vadd.f32 %v572, 1e-05
        %v637 = vadd.f32 %v573, 1e-05
        %v638 = vadd.f32 %v574, 1e-05
        %v639 = vadd.f32 %v575, 1e-05
        %v640 = vadd.f32 %v576, 1e-05
        %v641 = vadd.f32 %v577, 1e-05
        %v642 = vadd.f32 %v578, 1e-05
        %v643 = vadd.f32 %v579, 1e-05
        %v644 = vadd.f32 %v580, 1e-05
        %v645 = vadd.f32 %v581, 1e-05
        %v646 = vadd.f32 %v582, 1e-05
        %v647 = vadd.f32 %v583, 1e-05
        %v648 = vadd.f32 %v584, 1e-05
        %v649 = vadd.f32 %v585, 1e-05
        %v650 = vadd.f32 %v586, 1e-05
        %v651 = vadd.f32 %v587, 1e-05
        %v652 = vadd.f32 %v588, 1e-05
        %v653 = vadd.f32 %v589, 1e-05
        %v654 = vadd.f32 %v590, 1e-05
        %v655 = vrsqrt.pop %v623
        %v656 = vrsqrt.pop %v624
        %v657 = vrsqrt.pop %v625
        %v658 = vrsqrt.pop %v626
        %v659 = vrsqrt.pop %v627
        %v660 = vrsqrt.pop %v628
        %v661 = vrsqrt.pop %v629
        %v662 = vrsqrt.pop %v630
        %v663 = vrsqrt.pop %v631
        %v664 = vrsqrt.pop %v632
        %v665 = vrsqrt.pop %v633
        %v666 = vrsqrt.pop %v634
        %v667 = vrsqrt.pop %v635
        %v668 = vrsqrt.pop %v636
        %v669 = vrsqrt.pop %v637
        %v670 = vrsqrt.pop %v638
        %v671 = vrsqrt.pop %v639
        %v672 = vrsqrt.pop %v640
        %v673 = vrsqrt.pop %v641
        %v674 = vrsqrt.pop %v642
        %v675 = vrsqrt.pop %v643
        %v676 = vrsqrt.pop %v644
        %v677 = vrsqrt.pop %v645
        %v678 = vrsqrt.pop %v646
        %v679 = vrsqrt.pop %v647
        %v680 = vrsqrt.pop %v648
        %v681 = vrsqrt.pop %v649
        %v682 = vrsqrt.pop %v650
        %v683 = vrsqrt.pop %v651
        %v684 = vrsqrt.pop %v652
        %v685 = vrsqrt.pop %v653
        %v686 = vrsqrt.pop %v654
        %v687 = vmul.f32 %v591, %v655
        %v688 = vmul.f32 %v592, %v656
        %v689 = vmul.f32 %v593, %v657
        %v690 = vmul.f32 %v594, %v658
        %v691 = vmul.f32 %v595, %v659
        %v692 = vmul.f32 %v596, %v660
        %v693 = vmul.f32 %v597, %v661
        %v694 = vmul.f32 %v598, %v662
        %v695 = vmul.f32 %v599, %v663
        %v696 = vmul.f32 %v600, %v664
        %v697 = vmul.f32 %v601, %v665
        %v698 = vmul.f32 %v602, %v666
        %v699 = vmul.f32 %v603, %v667
        %v700 = vmul.f32 %v604, %v668
        %v701 = vmul.f32 %v605, %v669
        %v702 = vmul.f32 %v606, %v670
        %v703 = vmul.f32 %v607, %v671
        %v704 = vmul.f32 %v608, %v672
        %v705 = vmul.f32 %v609, %v673
        %v706 = vmul.f32 %v610, %v674
        %v707 = vmul.f32 %v611, %v675
        %v708 = vmul.f32 %v612, %v676
        %v709 = vmul.f32 %v613, %v677
        %v710 = vmul.f32 %v614, %v678
        %v711 = vmul.f32 %v615, %v679
        %v712 = vmul.f32 %v616, %v680
        %v713 = vmul.f32 %v617, %v681
        %v714 = vmul.f32 %v618, %v682
        %v715 = vmul.f32 %v619, %v683
        %v716 = vmul.f32 %v620, %v684
        %v717 = vmul.f32 %v621, %v685
        %v718 = vmul.f32 %v622, %v686
        %v719 = vpack.c.bf16 %v688, %v687
        %v720 = vpack.c.bf16 %v690, %v689
        %v721 = vpack.c.bf16 %v692, %v691
        %v722 = vpack.c.bf16 %v694, %v693
        %v723 = vpack.c.bf16 %v696, %v695
        %v724 = vpack.c.bf16 %v698, %v697
        %v725 = vpack.c.bf16 %v700, %v699
        %v726 = vpack.c.bf16 %v702, %v701
        %v727 = vpack.c.bf16 %v704, %v703
        %v728 = vpack.c.bf16 %v706, %v705
        %v729 = vpack.c.bf16 %v708, %v707
        %v730 = vpack.c.bf16 %v710, %v709
        %v731 = vpack.c.bf16 %v712, %v711
        %v732 = vpack.c.bf16 %v714, %v713
        %v733 = vpack.c.bf16 %v716, %v715
        %v734 = vpack.c.bf16 %v718, %v717
        %v735 = vld [vmem:[#allocation5] sm:$0xf]
        %v736 = vld [vmem:[#allocation5 + $0x4] sm:$0xf]
        %v737 = vld [vmem:[#allocation5 + $0x8] sm:$0xf]
        %v738 = vld [vmem:[#allocation5 + $0xc] sm:$0xf]
        %v739 = vld [vmem:[#allocation5 + $0x10] sm:$0xf]
        %v740 = vld [vmem:[#allocation5 + $0x14] sm:$0xf]
        %v741 = vld [vmem:[#allocation5 + $0x18] sm:$0xf]
        %v742 = vld [vmem:[#allocation5 + $0x1c] sm:$0xf]
        %v743 = vld [vmem:[#allocation5 + $0x20] sm:$0xf]
        %v744 = vld [vmem:[#allocation5 + $0x24] sm:$0xf]
        %v745 = vld [vmem:[#allocation5 + $0x28] sm:$0xf]
        %v746 = vld [vmem:[#allocation5 + $0x2c] sm:$0xf]
        %v747 = vld [vmem:[#allocation5 + $0x30] sm:$0xf]
        %v748 = vld [vmem:[#allocation5 + $0x34] sm:$0xf]
        %v749 = vld [vmem:[#allocation5 + $0x38] sm:$0xf]
        %v750 = vld [vmem:[#allocation5 + $0x3c] sm:$0xf]
        %v767 = vunpack.c.l.b16 %v735
        %v768 = vunpack.c.l.b16 %v736
        %v769 = vunpack.c.l.b16 %v737
        %v770 = vunpack.c.l.b16 %v738
        %v771 = vunpack.c.l.b16 %v739
        %v772 = vunpack.c.l.b16 %v740
        %v773 = vunpack.c.l.b16 %v741
        %v774 = vunpack.c.l.b16 %v742
        %v775 = vunpack.c.l.b16 %v743
        %v776 = vunpack.c.l.b16 %v744
        %v777 = vunpack.c.l.b16 %v745
        %v778 = vunpack.c.l.b16 %v746
        %v779 = vunpack.c.l.b16 %v747
        %v780 = vunpack.c.l.b16 %v748
        %v781 = vunpack.c.l.b16 %v749
        %v782 = vunpack.c.l.b16 %v750
        %v783 = vpack.c.b16 %v768, %v767
        %v784 = vpack.c.b16 %v770, %v769
        %v785 = vpack.c.b16 %v772, %v771
        %v786 = vpack.c.b16 %v774, %v773
        %v787 = vpack.c.b16 %v776, %v775
        %v788 = vpack.c.b16 %v778, %v777
        %v789 = vpack.c.b16 %v780, %v779
        %v790 = vpack.c.b16 %v782, %v781
        %799 = vmatprep.subr.bf16.mxu0 0
        %800 = vmatpush1.bf16.msra.mxu0 %v783
        %801 = vmatprep.subr.bf16.mxu0 0
        %802 = vmatpush1.bf16.msra.mxu0 %v784
        %803 = vmatprep.subr.bf16.mxu0 0
        %804 = vmatpush1.bf16.msra.mxu0 %v785
        %805 = vmatprep.subr.bf16.mxu0 0
        %806 = vmatpush1.bf16.msra.mxu0 %v786
        %807 = vmatprep.subr.bf16.mxu0 0
        %808 = vmatpush1.bf16.msra.mxu0 %v787
        %809 = vmatprep.subr.bf16.mxu0 0
        %810 = vmatpush1.bf16.msra.mxu0 %v788
        %811 = vmatprep.subr.bf16.mxu0 0
        %812 = vmatpush1.bf16.msra.mxu0 %v789
        %813 = vmatprep.subr.bf16.mxu0 0
        %814 = vmatpush1.bf16.msra.mxu0 %v790
        %815 = vmatprep.subr.bf16.mxu0 0
        %816 = vmatpush1.bf16.msra.mxu0 0
        %817 = vmatprep.subr.bf16.mxu0 0
        %818 = vmatpush1.bf16.msra.mxu0 0
        %819 = vmatprep.subr.bf16.mxu0 0
        %820 = vmatpush1.bf16.msra.mxu0 0
        %821 = vmatprep.subr.bf16.mxu0 0
        %822 = vmatpush1.bf16.msra.mxu0 0
        %823 = vmatprep.subr.bf16.mxu0 0
        %824 = vmatpush1.bf16.msra.mxu0 0
        %825 = vmatprep.subr.bf16.mxu0 0
        %826 = vmatpush1.bf16.msra.mxu0 0
        %827 = vmatprep.subr.bf16.mxu0 0
        %828 = vmatpush1.bf16.msra.mxu0 0
        %829 = vmatprep.subr.bf16.mxu0 0
        %830 = vmatpush1.bf16.msra.mxu0 0
        %831 = vmatprep.mubr.bf16.mxu0 0
        %832 = vmatmul.mubr.bf16.gmra.mrb[0].mxu0 %v719
        %v833 = vpop.f32.mrb[0].mxu0
        %v834 = vadd.f32 0.0, %v833
        %v835 = vpop.f32.mrb[0].mxu0
        %v836 = vpop.f32.mrb[0].mxu0
        %v837 = vadd.f32 0.0, %v836
        %v838 = vpop.f32.mrb[0].mxu0
        %839 = vmatprep.mubr.bf16.mxu0 0
        %840 = vmatmul.mubr.bf16.gmra.mrb[0].mxu0 %v720
        %v841 = vpop.f32.mrb[0].mxu0
        %v842 = vadd.f32 0.0, %v841
        %v843 = vpop.f32.mrb[0].mxu0
        %v844 = vpop.f32.mrb[0].mxu0
        %v845 = vadd.f32 0.0, %v844
        %v846 = vpop.f32.mrb[0].mxu0
        %847 = vmatprep.mubr.bf16.mxu0 0
        %848 = vmatmul.mubr.bf16.gmra.mrb[0].mxu0 %v721
        %v849 = vpop.f32.mrb[0].mxu0
        %v850 = vadd.f32 0.0, %v849
        %v851 = vpop.f32.mrb[0].mxu0
        %v852 = vpop.f32.mrb[0].mxu0
        %v853 = vadd.f32 0.0, %v852
        %v854 = vpop.f32.mrb[0].mxu0
        %855 = vmatprep.mubr.bf16.mxu0 0
        %856 = vmatmul.mubr.bf16.gmra.mrb[0].mxu0 %v722
        %v857 = vpop.f32.mrb[0].mxu0
        %v858 = vadd.f32 0.0, %v857
        %v859 = vpop.f32.mrb[0].mxu0
        %v860 = vpop.f32.mrb[0].mxu0
        %v861 = vadd.f32 0.0, %v860
        %v862 = vpop.f32.mrb[0].mxu0
        %863 = vmatprep.mubr.bf16.mxu0 0
        %864 = vmatmul.mubr.bf16.gmra.mrb[0].mxu0 %v723
        %v865 = vpop.f32.mrb[0].mxu0
        %v866 = vadd.f32 0.0, %v865
        %v867 = vpop.f32.mrb[0].mxu0
        %v868 = vpop.f32.mrb[0].mxu0
        %v869 = vadd.f32 0.0, %v868
        %v870 = vpop.f32.mrb[0].mxu0
        %871 = vmatprep.mubr.bf16.mxu0 0
        %872 = vmatmul.mubr.bf16.gmra.mrb[0].mxu0 %v724
        %v873 = vpop.f32.mrb[0].mxu0
        %v874 = vadd.f32 0.0, %v873
        %v875 = vpop.f32.mrb[0].mxu0
        %v876 = vpop.f32.mrb[0].mxu0
        %v877 = vadd.f32 0.0, %v876
        %v878 = vpop.f32.mrb[0].mxu0
        %879 = vmatprep.mubr.bf16.mxu0 0
        %880 = vmatmul.mubr.bf16.gmra.mrb[0].mxu0 %v725
        %v881 = vpop.f32.mrb[0].mxu0
        %v882 = vadd.f32 0.0, %v881
        %v883 = vpop.f32.mrb[0].mxu0
        %v884 = vpop.f32.mrb[0].mxu0
        %v885 = vadd.f32 0.0, %v884
        %v886 = vpop.f32.mrb[0].mxu0
        %887 = vmatprep.mubr.bf16.mxu0 0
        %888 = vmatmul.mubr.bf16.gmra.mrb[0].mxu0 %v726
        %v889 = vpop.f32.mrb[0].mxu0
        %v890 = vadd.f32 0.0, %v889
        %v891 = vpop.f32.mrb[0].mxu0
        %v892 = vpop.f32.mrb[0].mxu0
        %v893 = vadd.f32 0.0, %v892
        %v894 = vpop.f32.mrb[0].mxu0
        %895 = vmatprep.mubr.bf16.mxu0 0
        %896 = vmatmul.mubr.bf16.gmra.mrb[0].mxu0 %v727
        %v897 = vpop.f32.mrb[0].mxu0
        %v898 = vadd.f32 0.0, %v897
        %v899 = vpop.f32.mrb[0].mxu0
        %v900 = vpop.f32.mrb[0].mxu0
        %v901 = vadd.f32 0.0, %v900
        %v902 = vpop.f32.mrb[0].mxu0
        %903 = vmatprep.mubr.bf16.mxu0 0
        %904 = vmatmul.mubr.bf16.gmra.mrb[0].mxu0 %v728
        %v905 = vpop.f32.mrb[0].mxu0
        %v906 = vadd.f32 0.0, %v905
        %v907 = vpop.f32.mrb[0].mxu0
        %v908 = vpop.f32.mrb[0].mxu0
        %v909 = vadd.f32 0.0, %v908
        %v910 = vpop.f32.mrb[0].mxu0
        %911 = vmatprep.mubr.bf16.mxu0 0
        %912 = vmatmul.mubr.bf16.gmra.mrb[0].mxu0 %v729
        %v913 = vpop.f32.mrb[0].mxu0
        %v914 = vadd.f32 0.0, %v913
        %v915 = vpop.f32.mrb[0].mxu0
        %v916 = vpop.f32.mrb[0].mxu0
        %v917 = vadd.f32 0.0, %v916
        %v918 = vpop.f32.mrb[0].mxu0
        %919 = vmatprep.mubr.bf16.mxu0 0
        %920 = vmatmul.mubr.bf16.gmra.mrb[0].mxu0 %v730
        %v921 = vpop.f32.mrb[0].mxu0
        %v922 = vadd.f32 0.0, %v921
        %v923 = vpop.f32.mrb[0].mxu0
        %v924 = vpop.f32.mrb[0].mxu0
        %v925 = vadd.f32 0.0, %v924
        %v926 = vpop.f32.mrb[0].mxu0
        %927 = vmatprep.mubr.bf16.mxu0 0
        %928 = vmatmul.mubr.bf16.gmra.mrb[0].mxu0 %v731
        %v929 = vpop.f32.mrb[0].mxu0
        %v930 = vadd.f32 0.0, %v929
        %v931 = vpop.f32.mrb[0].mxu0
        %v932 = vpop.f32.mrb[0].mxu0
        %v933 = vadd.f32 0.0, %v932
        %v934 = vpop.f32.mrb[0].mxu0
        %935 = vmatprep.mubr.bf16.mxu0 0
        %936 = vmatmul.mubr.bf16.gmra.mrb[0].mxu0 %v732
        %v937 = vpop.f32.mrb[0].mxu0
        %v938 = vadd.f32 0.0, %v937
        %v939 = vpop.f32.mrb[0].mxu0
        %v940 = vpop.f32.mrb[0].mxu0
        %v941 = vadd.f32 0.0, %v940
        %v942 = vpop.f32.mrb[0].mxu0
        %943 = vmatprep.mubr.bf16.mxu0 0
        %944 = vmatmul.mubr.bf16.gmra.mrb[0].mxu0 %v733
        %v945 = vpop.f32.mrb[0].mxu0
        %v946 = vadd.f32 0.0, %v945
        %v947 = vpop.f32.mrb[0].mxu0
        %v948 = vpop.f32.mrb[0].mxu0
        %v949 = vadd.f32 0.0, %v948
        %v950 = vpop.f32.mrb[0].mxu0
        %951 = vmatprep.mubr.bf16.mxu0 0
        %952 = vmatmul.mubr.bf16.gmra.mrb[0].mxu0 %v734
        %v953 = vpop.f32.mrb[0].mxu0
        %v954 = vadd.f32 0.0, %v953
        %v955 = vpop.f32.mrb[0].mxu0
        %v956 = vpop.f32.mrb[0].mxu0
        %v957 = vadd.f32 0.0, %v956
        %v958 = vpop.f32.mrb[0].mxu0
        %959 = vdwg.mxu0
        %v960 = vadd.f32 %v239, %v834
        %v961 = vadd.f32 %v240, %v837
        %v962 = vadd.f32 %v241, %v842
        %v963 = vadd.f32 %v242, %v845
        %v964 = vadd.f32 %v243, %v850
        %v965 = vadd.f32 %v244, %v853
        %v966 = vadd.f32 %v245, %v858
        %v967 = vadd.f32 %v246, %v861
        %v968 = vadd.f32 %v247, %v866
        %v969 = vadd.f32 %v248, %v869
        %v970 = vadd.f32 %v249, %v874
        %v971 = vadd.f32 %v250, %v877
        %v972 = vadd.f32 %v251, %v882
        %v973 = vadd.f32 %v252, %v885
        %v974 = vadd.f32 %v253, %v890
        %v975 = vadd.f32 %v254, %v893
        %v976 = vadd.f32 %v255, %v898
        %v977 = vadd.f32 %v256, %v901
        %v978 = vadd.f32 %v257, %v906
        %v979 = vadd.f32 %v258, %v909
        %v980 = vadd.f32 %v259, %v914
        %v981 = vadd.f32 %v260, %v917
        %v982 = vadd.f32 %v261, %v922
        %v983 = vadd.f32 %v262, %v925
        %v984 = vadd.f32 %v263, %v930
        %v985 = vadd.f32 %v264, %v933
        %v986 = vadd.f32 %v265, %v938
        %v987 = vadd.f32 %v266, %v941
        %v988 = vadd.f32 %v267, %v946
        %v989 = vadd.f32 %v268, %v949
        %v990 = vadd.f32 %v269, %v954
        %v991 = vadd.f32 %v270, %v957
        %v992 = vld [vmem:[%s2] sm:$0x1]
        %v994 = vlaneseq
        %v995 = vshrl.u32 %v994, 7
        %v996 = vsub.s32 0, %v995
        %v997 = vrot.slane %v992, %v996
        %v999 = vadd.f32 %v960, %v997
        %v1000 = vadd.f32 %v961, %v997
        %v1001 = vadd.f32 %v962, %v997
        %v1002 = vadd.f32 %v963, %v997
        %v1003 = vadd.f32 %v964, %v997
        %v1004 = vadd.f32 %v965, %v997
        %v1005 = vadd.f32 %v966, %v997
        %v1006 = vadd.f32 %v967, %v997
        %v1007 = vadd.f32 %v968, %v997
        %v1008 = vadd.f32 %v969, %v997
        %v1009 = vadd.f32 %v970, %v997
        %v1010 = vadd.f32 %v971, %v997
        %v1011 = vadd.f32 %v972, %v997
        %v1012 = vadd.f32 %v973, %v997
        %v1013 = vadd.f32 %v974, %v997
        %v1014 = vadd.f32 %v975, %v997
        %v1015 = vadd.f32 %v976, %v997
        %v1016 = vadd.f32 %v977, %v997
        %v1017 = vadd.f32 %v978, %v997
        %v1018 = vadd.f32 %v979, %v997
        %v1019 = vadd.f32 %v980, %v997
        %v1020 = vadd.f32 %v981, %v997
        %v1021 = vadd.f32 %v982, %v997
        %v1022 = vadd.f32 %v983, %v997
        %v1023 = vadd.f32 %v984, %v997
        %v1024 = vadd.f32 %v985, %v997
        %v1025 = vadd.f32 %v986, %v997
        %v1026 = vadd.f32 %v987, %v997
        %v1027 = vadd.f32 %v988, %v997
        %v1028 = vadd.f32 %v989, %v997
        %v1029 = vadd.f32 %v990, %v997
        %v1030 = vadd.f32 %v991, %v997
        %v1031 = vpack.c.bf16 %v1000, %v999
        %v1032 = vpack.c.bf16 %v1002, %v1001
        %v1033 = vpack.c.bf16 %v1004, %v1003
        %v1034 = vpack.c.bf16 %v1006, %v1005
        %v1035 = vpack.c.bf16 %v1008, %v1007
        %v1036 = vpack.c.bf16 %v1010, %v1009
        %v1037 = vpack.c.bf16 %v1012, %v1011
        %v1038 = vpack.c.bf16 %v1014, %v1013
        %v1039 = vpack.c.bf16 %v1016, %v1015
        %v1040 = vpack.c.bf16 %v1018, %v1017
        %v1041 = vpack.c.bf16 %v1020, %v1019
        %v1042 = vpack.c.bf16 %v1022, %v1021
        %v1043 = vpack.c.bf16 %v1024, %v1023
        %v1044 = vpack.c.bf16 %v1026, %v1025
        %v1045 = vpack.c.bf16 %v1028, %v1027
        %v1046 = vpack.c.bf16 %v1030, %v1029
        %v1063 = vunpack.c.l.b16 %v1031
        %v1064 = vunpack.c.h.b16 %v1031
        %v1065 = vunpack.c.l.b16 %v1032
        %v1066 = vunpack.c.h.b16 %v1032
        %v1067 = vunpack.c.l.b16 %v1033
        %v1068 = vunpack.c.h.b16 %v1033
        %v1069 = vunpack.c.l.b16 %v1034
        %v1070 = vunpack.c.h.b16 %v1034
        %v1071 = vunpack.c.l.b16 %v1035
        %v1072 = vunpack.c.h.b16 %v1035
        %v1073 = vunpack.c.l.b16 %v1036
        %v1074 = vunpack.c.h.b16 %v1036
        %v1075 = vunpack.c.l.b16 %v1037
        %v1076 = vunpack.c.h.b16 %v1037
        %v1077 = vunpack.c.l.b16 %v1038
        %v1078 = vunpack.c.h.b16 %v1038
        %v1079 = vunpack.c.l.b16 %v1039
        %v1080 = vunpack.c.h.b16 %v1039
        %v1081 = vunpack.c.l.b16 %v1040
        %v1082 = vunpack.c.h.b16 %v1040
        %v1083 = vunpack.c.l.b16 %v1041
        %v1084 = vunpack.c.h.b16 %v1041
        %v1085 = vunpack.c.l.b16 %v1042
        %v1086 = vunpack.c.h.b16 %v1042
        %v1087 = vunpack.c.l.b16 %v1043
        %v1088 = vunpack.c.h.b16 %v1043
        %v1089 = vunpack.c.l.b16 %v1044
        %v1090 = vunpack.c.h.b16 %v1044
        %v1091 = vunpack.c.l.b16 %v1045
        %v1092 = vunpack.c.h.b16 %v1045
        %v1093 = vunpack.c.l.b16 %v1046
        %v1094 = vunpack.c.h.b16 %v1046
        %v1095 = vpack.c.b16 %v1063, %v1063
        %v1096 = vpack.c.b16 %v1064, %v1064
        %v1097 = vpack.c.b16 %v1065, %v1065
        %v1098 = vpack.c.b16 %v1066, %v1066
        %v1099 = vpack.c.b16 %v1067, %v1067
        %v1100 = vpack.c.b16 %v1068, %v1068
        %v1101 = vpack.c.b16 %v1069, %v1069
        %v1102 = vpack.c.b16 %v1070, %v1070
        %v1103 = vpack.c.b16 %v1071, %v1071
        %v1104 = vpack.c.b16 %v1072, %v1072
        %v1105 = vpack.c.b16 %v1073, %v1073
        %v1106 = vpack.c.b16 %v1074, %v1074
        %v1107 = vpack.c.b16 %v1075, %v1075
        %v1108 = vpack.c.b16 %v1076, %v1076
        %v1109 = vpack.c.b16 %v1077, %v1077
        %v1110 = vpack.c.b16 %v1078, %v1078
        %v1111 = vpack.c.b16 %v1079, %v1079
        %v1112 = vpack.c.b16 %v1080, %v1080
        %v1113 = vpack.c.b16 %v1081, %v1081
        %v1114 = vpack.c.b16 %v1082, %v1082
        %v1115 = vpack.c.b16 %v1083, %v1083
        %v1116 = vpack.c.b16 %v1084, %v1084
        %v1117 = vpack.c.b16 %v1085, %v1085
        %v1118 = vpack.c.b16 %v1086, %v1086
        %v1119 = vpack.c.b16 %v1087, %v1087
        %v1120 = vpack.c.b16 %v1088, %v1088
        %v1121 = vpack.c.b16 %v1089, %v1089
        %v1122 = vpack.c.b16 %v1090, %v1090
        %v1123 = vpack.c.b16 %v1091, %v1091
        %v1124 = vpack.c.b16 %v1092, %v1092
        %v1125 = vpack.c.b16 %v1093, %v1093
        %v1126 = vpack.c.b16 %v1094, %v1094
        %1159 = vst [vmem:[%s203] sm:$0xf] %v1095
        %1160 = vst [vmem:[%s203 + $0x4] sm:$0xf] %v1096
        %1161 = vst [vmem:[%s203 + $0x8] sm:$0xf] %v1097
        %1162 = vst [vmem:[%s203 + $0xc] sm:$0xf] %v1098
        %1163 = vst [vmem:[%s203 + $0x10] sm:$0xf] %v1099
        %1164 = vst [vmem:[%s203 + $0x14] sm:$0xf] %v1100
        %1165 = vst [vmem:[%s203 + $0x18] sm:$0xf] %v1101
        %1166 = vst [vmem:[%s203 + $0x1c] sm:$0xf] %v1102
        %1167 = vst [vmem:[%s203 + $0x20] sm:$0xf] %v1103
        %1168 = vst [vmem:[%s203 + $0x24] sm:$0xf] %v1104
        %1169 = vst [vmem:[%s203 + $0x28] sm:$0xf] %v1105
        %1170 = vst [vmem:[%s203 + $0x2c] sm:$0xf] %v1106
        %1171 = vst [vmem:[%s203 + $0x30] sm:$0xf] %v1107
        %1172 = vst [vmem:[%s203 + $0x34] sm:$0xf] %v1108
        %1173 = vst [vmem:[%s203 + $0x38] sm:$0xf] %v1109
        %1174 = vst [vmem:[%s203 + $0x3c] sm:$0xf] %v1110
        %1175 = vst [vmem:[%s203 + $0x40] sm:$0xf] %v1111
        %1176 = vst [vmem:[%s203 + $0x44] sm:$0xf] %v1112
        %1177 = vst [vmem:[%s203 + $0x48] sm:$0xf] %v1113
        %1178 = vst [vmem:[%s203 + $0x4c] sm:$0xf] %v1114
        %1179 = vst [vmem:[%s203 + $0x50] sm:$0xf] %v1115
        %1180 = vst [vmem:[%s203 + $0x54] sm:$0xf] %v1116
        %1181 = vst [vmem:[%s203 + $0x58] sm:$0xf] %v1117
        %1182 = vst [vmem:[%s203 + $0x5c] sm:$0xf] %v1118
        %1183 = vst [vmem:[%s203 + $0x60] sm:$0xf] %v1119
        %1184 = vst [vmem:[%s203 + $0x64] sm:$0xf] %v1120
        %1185 = vst [vmem:[%s203 + $0x68] sm:$0xf] %v1121
        %1186 = vst [vmem:[%s203 + $0x6c] sm:$0xf] %v1122
        %1187 = vst [vmem:[%s203 + $0x70] sm:$0xf] %v1123
        %1188 = vst [vmem:[%s203 + $0x74] sm:$0xf] %v1124
        %1189 = vst [vmem:[%s203 + $0x78] sm:$0xf] %v1125
        %1190 = vst [vmem:[%s203 + $0x7c] sm:$0xf] %v1126
        %s1191 = sand.u32 %s97, 1
        %s1192 = scalar_lea.sflag [#allocation4], %s1191
        %s1193 = sand.u32 %s97, 1
        %s1194 = smul.addr %s1193, 128
        %s1195 = scalar_lea.vmem [#allocation7], %s1194
        // Predicated region
        $region41: #{tpu_custom_call.1} parent=31 // pred_check
          %p1196 = pneg %p107
        $region42: #{tpu_custom_call.1} parent=31 // pred_check_branch
          %1198 = sbr.rel (%p1196) target = $region44
        $region43: #{tpu_custom_call.1} parent=31 // pred_region
          %s1199 = smul.u32 32, %s21
          %s1201 = ssub.s32 2048, 2048
          %1202 = vsyncadd %s1192, %s1201
          %s1203 = smul.addr %s1199, 64
          %s1204 = scalar_lea.hbm %s3, %s1203
          %s1205 = sshll.u32 %s1195, 4
          %s1206 = int_to_ptr.vmem [resolvable:$true] %s1205
          %1211 = dma.vmem_to_hbm [thread:$0]  %s1206, 2048, %s1204, %s1192, 64, 64, 4
        $region44: #{tpu_custom_call.1} parent=31 // pred_fallthru
          _
      $region32: #{tpu_custom_call.1} parent=5 // pred_fallthru
        _
      %p1212 = scmp.le.s32.totalorder 2, %s16
      // Predicated region
      $region45: #{tpu_custom_call.1} parent=5 // pred_check
        %p1213 = pneg %p1212
      $region46: #{tpu_custom_call.1} parent=5 // pred_check_branch
        %1215 = sbr.rel (%p1213) target = $region48
      $region47: #{tpu_custom_call.1} parent=5 // pred_region
        %s1216 = ssub.s32 %s16, 2
        // Predicated region
        $region49: #{tpu_custom_call.1} parent=47 // pred_check
          %p1217 = pneg %p113
        $region50: #{tpu_custom_call.1} parent=47 // pred_check_branch
          %1219 = sbr.rel (%p1217) target = $region52
        $region51: #{tpu_custom_call.1} parent=47 // pred_region
          %s1220 = sand.u32 %s98, 1
          %s1221 = scalar_lea.sflag [#allocation4], %s1220
          %s1222 = sand.u32 %s98, 1
          %s1223 = smul.addr %s1222, 128
          %s1224 = scalar_lea.vmem [#allocation7], %s1223
          %1225 = dma.done %s1221, 2048
        $region52: #{tpu_custom_call.1} parent=47 // pred_fallthru
          _
      $region48: #{tpu_custom_call.1} parent=5 // pred_fallthru
        _
    $region6: #{tpu_custom_call.1} parent=1 // loop_footer
      %s20 = sadd.s32 1, %s16
    $region7: #{tpu_custom_call.1} parent=1 // loop_footer_branch
      %15 = sbr.rel target = $region3
    $region8: #{tpu_custom_call.1} parent=1 // loop_exit
      _
    %1226 = vsyncpa [#allocation3], 1
    %s1227 = scalar_lea.sflag [#allocation3], 1
    %1228 = vsyncpa %s1227, 1
    %1229 = vsyncpa [#allocation6], 1
    %1230 = vsyncpa [#allocation4], 1
    %s1231 = scalar_lea.sflag [#allocation4], 1
    %1232 = vsyncpa %s1231, 1

</llo_original>
